<compile_context>
chip_gen: v5e
topology: v5e:2x2
jax: 0.10.0
libtpu: 0.0.40
codegen_flags: <defaults>
</compile_context>

<pallas_src>
import functools
import math

import jax
import jax.numpy as jnp
from jax import lax
from jax.experimental import pallas as pl
from jax.experimental.pallas import tpu as pltpu


def _mha_kernel(*refs, softmax_temp, num_heads, qk_head_dim, v_head_dim,
                has_attn_mask):
    # Refs (per grid step = one batch element, all heads):
    #   q_ref: (L, H*E)   k_ref: (S, H*E)   v_ref: (S, H*D)
    #   [amask_ref: (L, S)]  kmask_ref: (1, S)  o_ref: (L, H*D)
    if has_attn_mask:
        q_ref, k_ref, v_ref, amask_ref, kmask_ref, o_ref = refs
    else:
        q_ref, k_ref, v_ref, kmask_ref, o_ref = refs
        amask_ref = None

    # Combined additive mask (already scaled by softmax_temp in the wrapper),
    # built ONCE per grid step and shared by all heads.
    mask = kmask_ref[...]                          # (1, S) f32
    if amask_ref is not None:
        mask = amask_ref[...] + mask               # (L, S) f32

    for h in range(num_heads):                     # trace-time unrolled (H small)
        q = q_ref[:, h * qk_head_dim:(h + 1) * qk_head_dim] * softmax_temp  # (L, E)
        k = k_ref[:, h * qk_head_dim:(h + 1) * qk_head_dim]                 # (S, E)
        v = v_ref[:, h * v_head_dim:(h + 1) * v_head_dim]                   # (S, D)

        # Q K^T on the MXU, contracting last dims of both (no transpose of K).
        s = lax.dot_general(q, k, dimension_numbers=(((1,), (1,)), ((), ())),
                            preferred_element_type=jnp.float32)             # (L, S)
        s = s + mask

        # Softmax over S in f32.  The row max is subtracted, so even a row
        # whose keys are all masked (finite -1e9) keeps denom >= 1 (no NaN).
        m = jnp.max(s, axis=-1, keepdims=True)
        e = jnp.exp(s - m)
        denom = jnp.sum(e, axis=-1, keepdims=True)
        p = e * pl.reciprocal(denom, approx=True)                 # EUP reciprocal
        # TODO(synk): attention dropout (p=0.1) is stochastic; eval-mode identity.

        # P V on the MXU in the value dtype (bf16-friendly), f32 accumulate.
        out_h = jnp.dot(p.astype(v.dtype), v,
                        preferred_element_type=jnp.float32)                 # (L, D)

        # The output block itself is lane-dense (L, H*D), so the HBM writeback
        # is a single dense DMA; per-head writes are static lane sub-slices.
        o_ref[:, h * v_head_dim:(h + 1) * v_head_dim] = out_h.astype(o_ref.dtype)


def full_attention(queries, keys, values, attn_additive=None,
                   key_len_additive=None, softmax_temp=None):
    """queries (N,L,H,E), keys (N,S,H,E), values (N,S,H,D).
    attn_additive: optional (L,S) additive attention mask (None == FullMask
    all-ones, the decoder layer's default -> the input is dropped entirely).
    key_len_additive: optional (N,S) additive key-length mask.
    Returns (N,L,H,D)."""
    N, L, H, E = queries.shape
    _, S, _, D = values.shape
    if softmax_temp is None:
        softmax_temp = 1.0 / math.sqrt(E)
    softmax_temp = float(softmax_temp)

    # Free, contiguous reshapes (no transpose, no HBM round trip): the head
    # dimension is merged into the lane dimension.
    q2 = queries.reshape(N, L, H * E)
    k2 = keys.reshape(N, S, H * E)
    v2 = values.reshape(N, S, H * D)

    if key_len_additive is None:
        key_len_additive = jnp.zeros((N, S), dtype=jnp.float32)
    # Pre-scale the tiny additive masks by softmax_temp so the kernel can fold
    # the temperature into q and still compute softmax(temp*(QK+masks)) exactly.
    kmask = (key_len_additive.astype(jnp.float32) * softmax_temp).reshape(N, 1, S)

    has_attn_mask = attn_additive is not None
    args = [q2, k2, v2]
    in_specs = [
        pl.BlockSpec((None, L, H * E), lambda n: (n, 0, 0)),   # q (native layout)
        pl.BlockSpec((None, S, H * E), lambda n: (n, 0, 0)),   # k
        pl.BlockSpec((None, S, H * D), lambda n: (n, 0, 0)),   # v
    ]
    if has_attn_mask:
        args.append(attn_additive.astype(jnp.float32) * softmax_temp)
        in_specs.append(pl.BlockSpec((L, S), lambda n: (0, 0)))        # shared mask
    args.append(kmask)
    in_specs.append(pl.BlockSpec((None, 1, S), lambda n: (n, 0, 0)))   # key lengths

    out = pl.pallas_call(
        functools.partial(_mha_kernel, softmax_temp=softmax_temp, num_heads=H,
                          qk_head_dim=E, v_head_dim=D,
                          has_attn_mask=has_attn_mask),
        out_shape=jax.ShapeDtypeStruct((N, L, H * D), queries.dtype),
        grid_spec=pltpu.PrefetchScalarGridSpec(
            num_scalar_prefetch=0,
            grid=(N,),
            in_specs=in_specs,
            out_specs=pl.BlockSpec((None, L, H * D), lambda n: (n, 0, 0)),
        ),
        compiler_params=pltpu.CompilerParams(
            dimension_semantics=("parallel",)),
    )(*args)

    return out.reshape(N, L, H, D)     # free reshape back to (N, L, H, D)


def _reference(queries, keys, values, attn_additive, key_len_additive,
               softmax_temp):
    qk = jnp.einsum('nlhe,nshe->nhls', queries, keys)
    qk = qk + attn_additive[None, None]
    qk = qk + key_len_additive[:, None, None]
    a = jax.nn.softmax(softmax_temp * qk, axis=-1)
    return jnp.einsum('nhls,nshd->nlhd', a, values)


if __name__ == "__main__":
    N, L, S, H, E, D = 2, 8, 8, 4, 32, 32            # H*D = 128 -> lane-dense out
    key = jax.random.PRNGKey(0)
    kq, kk, kv = jax.random.split(key, 3)
    queries = jax.random.normal(kq, (N, L, H, E), dtype=jnp.float32)
    keys = jax.random.normal(kk, (N, S, H, E), dtype=jnp.float32)
    values = jax.random.normal(kv, (N, S, H, D), dtype=jnp.float32)

    softmax_temp = 1.0 / math.sqrt(E)

    # key_lengths: sequence 0 uses all S keys, sequence 1 the first S-2 keys.
    key_valid = jnp.array([[1.0] * S, [1.0] * (S - 2) + [0.0] * 2], jnp.float32)
    key_len_additive = jnp.where(key_valid > 0, 0.0, -1e9).astype(jnp.float32)

    # Case 1: attn_mask.all_ones (decoder-layer default FullMask): the (L,S)
    # mask input is dropped from the kernel call entirely.
    out1 = jax.block_until_ready(
        full_attention(queries, keys, values, None, key_len_additive))
    ref1 = _reference(queries, keys, values, jnp.zeros((L, S), jnp.float32),
                      key_len_additive, softmax_temp)
    assert out1.shape == (N, L, H, D)
    assert jnp.allclose(out1, ref1, atol=5e-3, rtol=5e-3), "mismatch (no attn mask)"

    # Case 2: explicit (causal) additive attention mask.
    causal = jnp.where(jnp.tril(jnp.ones((L, S), jnp.float32)) > 0, 0.0, -1e9)
    out2 = jax.block_until_ready(
        full_attention(queries, keys, values, causal, key_len_additive))
    ref2 = _reference(queries, keys, values, causal, key_len_additive,
                      softmax_temp)
    assert jnp.allclose(out2, ref2, atol=5e-3, rtol=5e-3), "mismatch (causal mask)"

    # Case 3: bf16 inputs stay bf16 on the MXU (softmax still in f32).
    qb, kb, vb = (t.astype(jnp.bfloat16) for t in (queries, keys, values))
    out3 = jax.block_until_ready(
        full_attention(qb, kb, vb, causal, key_len_additive))
    ref3 = _reference(qb.astype(jnp.float32), kb.astype(jnp.float32),
                      vb.astype(jnp.float32), causal, key_len_additive,
                      softmax_temp)
    assert out3.dtype == jnp.bfloat16
    assert jnp.allclose(out3.astype(jnp.float32), ref3, atol=5e-2, rtol=5e-2), \
        "mismatch (bf16)"

    print("KERNEL_OK")
</pallas_src>

<mosaic_0001>
module attributes {stable_mosaic.version = 11 : i64} {
  func.func @_mha_kernel(%arg0: i32, %arg1: memref<1x8x128xf32, #tpu.memory_space<vmem>>, %arg2: memref<1x8x128xf32, #tpu.memory_space<vmem>>, %arg3: memref<1x8x128xf32, #tpu.memory_space<vmem>>, %arg4: memref<1x1x8xf32, #tpu.memory_space<vmem>>, %arg5: memref<1x8x128xf32, #tpu.memory_space<vmem>>) attributes {dimension_semantics = [#tpu.dimension_semantics<parallel>], iteration_bounds = array<i64: 2>, scalar_prefetch = 0 : i64, scratch_operands = 0 : i64, tpu.core_type = #tpu.core_type<tc>, window_params = [{transform_indices = @transform_0, window_bounds = array<i64: 1, 8, 128>}, {transform_indices = @transform_1, window_bounds = array<i64: 1, 8, 128>}, {transform_indices = @transform_2, window_bounds = array<i64: 1, 8, 128>}, {transform_indices = @transform_3, window_bounds = array<i64: 1, 1, 8>}, {transform_indices = @transform_4, window_bounds = array<i64: 1, 8, 128>}]} {
    %c0 = arith.constant 0 : index
    %c0_0 = arith.constant 0 : index
    %c0_1 = arith.constant 0 : index
    %0 = vector.load %arg4[%c0, %c0_0, %c0_1] : memref<1x1x8xf32, #tpu.memory_space<vmem>>, vector<1x1x8xf32>
    %1 = vector.shape_cast %0 : vector<1x1x8xf32> to vector<1x8xf32>
    %c0_2 = arith.constant 0 : index
    %c0_3 = arith.constant 0 : index
    %c0_4 = arith.constant 0 : index
    %2 = vector.load %arg1[%c0_2, %c0_3, %c0_4] : memref<1x8x128xf32, #tpu.memory_space<vmem>>, vector<1x8x32xf32>
    %3 = vector.shape_cast %2 : vector<1x8x32xf32> to vector<8x32xf32>
    %cst = arith.constant 0.176776692 : f32
    %4 = vector.broadcast %cst : f32 to vector<8x32xf32>
    %5 = arith.mulf %3, %4 : vector<8x32xf32>
    %c0_5 = arith.constant 0 : index
    %c0_6 = arith.constant 0 : index
    %c0_7 = arith.constant 0 : index
    %6 = vector.load %arg2[%c0_5, %c0_6, %c0_7] : memref<1x8x128xf32, #tpu.memory_space<vmem>>, vector<1x8x32xf32>
    %7 = vector.shape_cast %6 : vector<1x8x32xf32> to vector<8x32xf32>
    %c0_8 = arith.constant 0 : index
    %c0_9 = arith.constant 0 : index
    %c0_10 = arith.constant 0 : index
    %8 = vector.load %arg3[%c0_8, %c0_9, %c0_10] : memref<1x8x128xf32, #tpu.memory_space<vmem>>, vector<1x8x32xf32>
    %9 = vector.shape_cast %8 : vector<1x8x32xf32> to vector<8x32xf32>
    %cst_11 = arith.constant dense<0.000000e+00> : vector<8x8xf32>
    %10 = tpu.matmul %5, %7, %cst_11 {dimension_numbers = #tpu.dot_dimension_numbers<[1], [1], [0], [0], [0, 0, 1, 0], [], []>} : vector<8x32xf32>, vector<8x32xf32>, vector<8x8xf32> -> vector<8x8xf32>
    %11 = vector.broadcast %1 : vector<1x8xf32> to vector<8x8xf32>
    %12 = arith.addf %10, %11 : vector<8x8xf32>
    %cst_12 = arith.constant dense<0xFF800000> : vector<8xf32>
    %13 = vector.multi_reduction <maximumf>, %12, %cst_12 [1] : vector<8x8xf32> to vector<8xf32>
    %14 = vector.shape_cast %13 : vector<8xf32> to vector<8x1xf32>
    %15 = vector.broadcast %14 : vector<8x1xf32> to vector<8x8xf32>
    %16 = arith.subf %12, %15 : vector<8x8xf32>
    %17 = math.exp %16 : vector<8x8xf32>
    %cst_13 = arith.constant dense<0.000000e+00> : vector<8xf32>
    %18 = vector.multi_reduction <add>, %17, %cst_13 [1] : vector<8x8xf32> to vector<8xf32>
    %19 = vector.shape_cast %18 : vector<8xf32> to vector<8x1xf32>
    %20 = tpu.reciprocal %19 {approx = true} : vector<8x1xf32> -> vector<8x1xf32>
    %21 = vector.broadcast %20 : vector<8x1xf32> to vector<8x8xf32>
    %22 = arith.mulf %17, %21 : vector<8x8xf32>
    %cst_14 = arith.constant dense<0.000000e+00> : vector<8x32xf32>
    %23 = tpu.matmul %22, %9, %cst_14 {dimension_numbers = #tpu.dot_dimension_numbers<[1], [0], [0], [1], [0, 0, 1, 1], [], []>} : vector<8x8xf32>, vector<8x32xf32>, vector<8x32xf32> -> vector<8x32xf32>
    %c0_15 = arith.constant 0 : index
    %c0_16 = arith.constant 0 : index
    %c0_17 = arith.constant 0 : index
    %24 = vector.load %arg5[%c0_15, %c0_16, %c0_17] : memref<1x8x128xf32, #tpu.memory_space<vmem>>, vector<1x8x32xf32>
    %25 = vector.shape_cast %24 : vector<1x8x32xf32> to vector<8x32xf32>
    %26 = vector.shape_cast %23 : vector<8x32xf32> to vector<1x8x32xf32>
    tpu.vector_store %arg5[%c0_15, %c0_16, %c0_17], %26 {strides = array<i32>} : memref<1x8x128xf32, #tpu.memory_space<vmem>>, vector<1x8x32xf32>,
    %c0_18 = arith.constant 0 : index
    %c0_19 = arith.constant 0 : index
    %c32 = arith.constant 32 : index
    %27 = vector.load %arg1[%c0_18, %c0_19, %c32] : memref<1x8x128xf32, #tpu.memory_space<vmem>>, vector<1x8x32xf32>
    %28 = vector.shape_cast %27 : vector<1x8x32xf32> to vector<8x32xf32>
    %cst_20 = arith.constant 0.176776692 : f32
    %29 = vector.broadcast %cst_20 : f32 to vector<8x32xf32>
    %30 = arith.mulf %28, %29 : vector<8x32xf32>
    %c0_21 = arith.constant 0 : index
    %c0_22 = arith.constant 0 : index
    %c32_23 = arith.constant 32 : index
    %31 = vector.load %arg2[%c0_21, %c0_22, %c32_23] : memref<1x8x128xf32, #tpu.memory_space<vmem>>, vector<1x8x32xf32>
    %32 = vector.shape_cast %31 : vector<1x8x32xf32> to vector<8x32xf32>
    %c0_24 = arith.constant 0 : index
    %c0_25 = arith.constant 0 : index
    %c32_26 = arith.constant 32 : index
    %33 = vector.load %arg3[%c0_24, %c0_25, %c32_26] : memref<1x8x128xf32, #tpu.memory_space<vmem>>, vector<1x8x32xf32>
    %34 = vector.shape_cast %33 : vector<1x8x32xf32> to vector<8x32xf32>
    %cst_27 = arith.constant dense<0.000000e+00> : vector<8x8xf32>
    %35 = tpu.matmul %30, %32, %cst_27 {dimension_numbers = #tpu.dot_dimension_numbers<[1], [1], [0], [0], [0, 0, 1, 0], [], []>} : vector<8x32xf32>, vector<8x32xf32>, vector<8x8xf32> -> vector<8x8xf32>
    %36 = vector.broadcast %1 : vector<1x8xf32> to vector<8x8xf32>
    %37 = arith.addf %35, %36 : vector<8x8xf32>
    %cst_28 = arith.constant dense<0xFF800000> : vector<8xf32>
    %38 = vector.multi_reduction <maximumf>, %37, %cst_28 [1] : vector<8x8xf32> to vector<8xf32>
    %39 = vector.shape_cast %38 : vector<8xf32> to vector<8x1xf32>
    %40 = vector.broadcast %39 : vector<8x1xf32> to vector<8x8xf32>
    %41 = arith.subf %37, %40 : vector<8x8xf32>
    %42 = math.exp %41 : vector<8x8xf32>
    %cst_29 = arith.constant dense<0.000000e+00> : vector<8xf32>
    %43 = vector.multi_reduction <add>, %42, %cst_29 [1] : vector<8x8xf32> to vector<8xf32>
    %44 = vector.shape_cast %43 : vector<8xf32> to vector<8x1xf32>
    %45 = tpu.reciprocal %44 {approx = true} : vector<8x1xf32> -> vector<8x1xf32>
    %46 = vector.broadcast %45 : vector<8x1xf32> to vector<8x8xf32>
    %47 = arith.mulf %42, %46 : vector<8x8xf32>
    %cst_30 = arith.constant dense<0.000000e+00> : vector<8x32xf32>
    %48 = tpu.matmul %47, %34, %cst_30 {dimension_numbers = #tpu.dot_dimension_numbers<[1], [0], [0], [1], [0, 0, 1, 1], [], []>} : vector<8x8xf32>, vector<8x32xf32>, vector<8x32xf32> -> vector<8x32xf32>
    %c0_31 = arith.constant 0 : index
    %c0_32 = arith.constant 0 : index
    %c32_33 = arith.constant 32 : index
    %49 = vector.load %arg5[%c0_31, %c0_32, %c32_33] : memref<1x8x128xf32, #tpu.memory_space<vmem>>, vector<1x8x32xf32>
    %50 = vector.shape_cast %49 : vector<1x8x32xf32> to vector<8x32xf32>
    %51 = vector.shape_cast %48 : vector<8x32xf32> to vector<1x8x32xf32>
    tpu.vector_store %arg5[%c0_31, %c0_32, %c32_33], %51 {strides = array<i32>} : memref<1x8x128xf32, #tpu.memory_space<vmem>>, vector<1x8x32xf32>,
    %c0_34 = arith.constant 0 : index
    %c0_35 = arith.constant 0 : index
    %c64 = arith.constant 64 : index
    %52 = vector.load %arg1[%c0_34, %c0_35, %c64] : memref<1x8x128xf32, #tpu.memory_space<vmem>>, vector<1x8x32xf32>
    %53 = vector.shape_cast %52 : vector<1x8x32xf32> to vector<8x32xf32>
    %cst_36 = arith.constant 0.176776692 : f32
    %54 = vector.broadcast %cst_36 : f32 to vector<8x32xf32>
    %55 = arith.mulf %53, %54 : vector<8x32xf32>
    %c0_37 = arith.constant 0 : index
    %c0_38 = arith.constant 0 : index
    %c64_39 = arith.constant 64 : index
    %56 = vector.load %arg2[%c0_37, %c0_38, %c64_39] : memref<1x8x128xf32, #tpu.memory_space<vmem>>, vector<1x8x32xf32>
    %57 = vector.shape_cast %56 : vector<1x8x32xf32> to vector<8x32xf32>
    %c0_40 = arith.constant 0 : index
    %c0_41 = arith.constant 0 : index
    %c64_42 = arith.constant 64 : index
    %58 = vector.load %arg3[%c0_40, %c0_41, %c64_42] : memref<1x8x128xf32, #tpu.memory_space<vmem>>, vector<1x8x32xf32>
    %59 = vector.shape_cast %58 : vector<1x8x32xf32> to vector<8x32xf32>
    %cst_43 = arith.constant dense<0.000000e+00> : vector<8x8xf32>
    %60 = tpu.matmul %55, %57, %cst_43 {dimension_numbers = #tpu.dot_dimension_numbers<[1], [1], [0], [0], [0, 0, 1, 0], [], []>} : vector<8x32xf32>, vector<8x32xf32>, vector<8x8xf32> -> vector<8x8xf32>
    %61 = vector.broadcast %1 : vector<1x8xf32> to vector<8x8xf32>
    %62 = arith.addf %60, %61 : vector<8x8xf32>
    %cst_44 = arith.constant dense<0xFF800000> : vector<8xf32>
    %63 = vector.multi_reduction <maximumf>, %62, %cst_44 [1] : vector<8x8xf32> to vector<8xf32>
    %64 = vector.shape_cast %63 : vector<8xf32> to vector<8x1xf32>
    %65 = vector.broadcast %64 : vector<8x1xf32> to vector<8x8xf32>
    %66 = arith.subf %62, %65 : vector<8x8xf32>
    %67 = math.exp %66 : vector<8x8xf32>
    %cst_45 = arith.constant dense<0.000000e+00> : vector<8xf32>
    %68 = vector.multi_reduction <add>, %67, %cst_45 [1] : vector<8x8xf32> to vector<8xf32>
    %69 = vector.shape_cast %68 : vector<8xf32> to vector<8x1xf32>
    %70 = tpu.reciprocal %69 {approx = true} : vector<8x1xf32> -> vector<8x1xf32>
    %71 = vector.broadcast %70 : vector<8x1xf32> to vector<8x8xf32>
    %72 = arith.mulf %67, %71 : vector<8x8xf32>
    %cst_46 = arith.constant dense<0.000000e+00> : vector<8x32xf32>
    %73 = tpu.matmul %72, %59, %cst_46 {dimension_numbers = #tpu.dot_dimension_numbers<[1], [0], [0], [1], [0, 0, 1, 1], [], []>} : vector<8x8xf32>, vector<8x32xf32>, vector<8x32xf32> -> vector<8x32xf32>
    %c0_47 = arith.constant 0 : index
    %c0_48 = arith.constant 0 : index
    %c64_49 = arith.constant 64 : index
    %74 = vector.load %arg5[%c0_47, %c0_48, %c64_49] : memref<1x8x128xf32, #tpu.memory_space<vmem>>, vector<1x8x32xf32>
    %75 = vector.shape_cast %74 : vector<1x8x32xf32> to vector<8x32xf32>
    %76 = vector.shape_cast %73 : vector<8x32xf32> to vector<1x8x32xf32>
    tpu.vector_store %arg5[%c0_47, %c0_48, %c64_49], %76 {strides = array<i32>} : memref<1x8x128xf32, #tpu.memory_space<vmem>>, vector<1x8x32xf32>,
    %c0_50 = arith.constant 0 : index
    %c0_51 = arith.constant 0 : index
    %c96 = arith.constant 96 : index
    %77 = vector.load %arg1[%c0_50, %c0_51, %c96] : memref<1x8x128xf32, #tpu.memory_space<vmem>>, vector<1x8x32xf32>
    %78 = vector.shape_cast %77 : vector<1x8x32xf32> to vector<8x32xf32>
    %cst_52 = arith.constant 0.176776692 : f32
    %79 = vector.broadcast %cst_52 : f32 to vector<8x32xf32>
    %80 = arith.mulf %78, %79 : vector<8x32xf32>
    %c0_53 = arith.constant 0 : index
    %c0_54 = arith.constant 0 : index
    %c96_55 = arith.constant 96 : index
    %81 = vector.load %arg2[%c0_53, %c0_54, %c96_55] : memref<1x8x128xf32, #tpu.memory_space<vmem>>, vector<1x8x32xf32>
    %82 = vector.shape_cast %81 : vector<1x8x32xf32> to vector<8x32xf32>
    %c0_56 = arith.constant 0 : index
    %c0_57 = arith.constant 0 : index
    %c96_58 = arith.constant 96 : index
    %83 = vector.load %arg3[%c0_56, %c0_57, %c96_58] : memref<1x8x128xf32, #tpu.memory_space<vmem>>, vector<1x8x32xf32>
    %84 = vector.shape_cast %83 : vector<1x8x32xf32> to vector<8x32xf32>
    %cst_59 = arith.constant dense<0.000000e+00> : vector<8x8xf32>
    %85 = tpu.matmul %80, %82, %cst_59 {dimension_numbers = #tpu.dot_dimension_numbers<[1], [1], [0], [0], [0, 0, 1, 0], [], []>} : vector<8x32xf32>, vector<8x32xf32>, vector<8x8xf32> -> vector<8x8xf32>
    %86 = vector.broadcast %1 : vector<1x8xf32> to vector<8x8xf32>
    %87 = arith.addf %85, %86 : vector<8x8xf32>
    %cst_60 = arith.constant dense<0xFF800000> : vector<8xf32>
    %88 = vector.multi_reduction <maximumf>, %87, %cst_60 [1] : vector<8x8xf32> to vector<8xf32>
    %89 = vector.shape_cast %88 : vector<8xf32> to vector<8x1xf32>
    %90 = vector.broadcast %89 : vector<8x1xf32> to vector<8x8xf32>
    %91 = arith.subf %87, %90 : vector<8x8xf32>
    %92 = math.exp %91 : vector<8x8xf32>
    %cst_61 = arith.constant dense<0.000000e+00> : vector<8xf32>
    %93 = vector.multi_reduction <add>, %92, %cst_61 [1] : vector<8x8xf32> to vector<8xf32>
    %94 = vector.shape_cast %93 : vector<8xf32> to vector<8x1xf32>
    %95 = tpu.reciprocal %94 {approx = true} : vector<8x1xf32> -> vector<8x1xf32>
    %96 = vector.broadcast %95 : vector<8x1xf32> to vector<8x8xf32>
    %97 = arith.mulf %92, %96 : vector<8x8xf32>
    %cst_62 = arith.constant dense<0.000000e+00> : vector<8x32xf32>
    %98 = tpu.matmul %97, %84, %cst_62 {dimension_numbers = #tpu.dot_dimension_numbers<[1], [0], [0], [1], [0, 0, 1, 1], [], []>} : vector<8x8xf32>, vector<8x32xf32>, vector<8x32xf32> -> vector<8x32xf32>
    %c0_63 = arith.constant 0 : index
    %c0_64 = arith.constant 0 : index
    %c96_65 = arith.constant 96 : index
    %99 = vector.load %arg5[%c0_63, %c0_64, %c96_65] : memref<1x8x128xf32, #tpu.memory_space<vmem>>, vector<1x8x32xf32>
    %100 = vector.shape_cast %99 : vector<1x8x32xf32> to vector<8x32xf32>
    %101 = vector.shape_cast %98 : vector<8x32xf32> to vector<1x8x32xf32>
    tpu.vector_store %arg5[%c0_63, %c0_64, %c96_65], %101 {strides = array<i32>} : memref<1x8x128xf32, #tpu.memory_space<vmem>>, vector<1x8x32xf32>,
    return
  }
  func.func @transform_0(%arg0: i32) -> (i32, i32, i32) {
    %c0_i32 = arith.constant 0 : i32
    %c0_i32_0 = arith.constant 0 : i32
    %c0_i32_1 = arith.constant 0 : i32
    return %arg0, %c0_i32, %c0_i32_0 : i32, i32, i32
  }
  func.func @transform_1(%arg0: i32) -> (i32, i32, i32) {
    %c0_i32 = arith.constant 0 : i32
    %c0_i32_0 = arith.constant 0 : i32
    %c0_i32_1 = arith.constant 0 : i32
    return %arg0, %c0_i32, %c0_i32_0 : i32, i32, i32
  }
  func.func @transform_2(%arg0: i32) -> (i32, i32, i32) {
    %c0_i32 = arith.constant 0 : i32
    %c0_i32_0 = arith.constant 0 : i32
    %c0_i32_1 = arith.constant 0 : i32
    return %arg0, %c0_i32, %c0_i32_0 : i32, i32, i32
  }
  func.func @transform_3(%arg0: i32) -> (i32, i32, i32) {
    %c0_i32 = arith.constant 0 : i32
    %c0_i32_0 = arith.constant 0 : i32
    %c0_i32_1 = arith.constant 0 : i32
    return %arg0, %c0_i32, %c0_i32_0 : i32, i32, i32
  }
  func.func @transform_4(%arg0: i32) -> (i32, i32, i32) {
    %c0_i32 = arith.constant 0 : i32
    %c0_i32_0 = arith.constant 0 : i32
    %c0_i32_1 = arith.constant 0 : i32
    return %arg0, %c0_i32, %c0_i32_0 : i32, i32, i32
  }
}

</mosaic_0001>

<llo_original>
// kernel: tpu_custom_call.1
$region0: #{tpu_custom_call.1}
  #allocation0 [shape = 'u32[]', space=smem, size = 0x4, offset = 0x4, fixed_abs, tag = 'smem constant byte address 0x4 - core index']
  #allocation1 [shape = 'u32[72,128]{1,0:T(1,128)}', space=vmem, size = 0x9000, scoped, tag = 'internal scratch']
  %s0 = inlined_call_operand.hbm [shape: f32[2,8,128], index: 0, kind: input, shape index: {}]
  %s1 = inlined_call_operand.hbm [shape: f32[2,8,128], index: 1, kind: input, shape index: {}]
  %s2 = inlined_call_operand.hbm [shape: f32[2,8,128], index: 2, kind: input, shape index: {}]
  %s3 = inlined_call_operand.vmem [shape: f32[2,1,8], index: 3, kind: input, shape index: {}]
  %s4 = inlined_call_operand.hbm [shape: f32[2,8,128], index: 4, kind: output, shape index: {}]
  %s5 = sld [smem:[#allocation0]]
  $region61: #{tpu_custom_call.1} parent=0
    _
  %s7 = ssub.s32 1, %s5
  %s8 = scalar_select 0, %s7, %s5
  $region1: #{tpu_custom_call.1} parent=0
    #allocation2 [shape = 'u8[8192]{0}', space=vmem, size = 0x2000, scoped, tag = 'input window, operand 0']
    #allocation3 [shape = 's32[2]{0}', space=sflag, size = 0x8, scoped, tag = 'scoped memory for tpu_custom_call.1']
    #allocation4 [shape = 's32[2]{0}', space=sflag, size = 0x8, scoped, tag = 'scoped memory for tpu_custom_call.1']
    #allocation5 [shape = 'u8[8192]{0}', space=vmem, size = 0x2000, scoped, tag = 'input window, operand 1']
    #allocation6 [shape = 's32[2]{0}', space=sflag, size = 0x8, scoped, tag = 'scoped memory for tpu_custom_call.1']
    #allocation7 [shape = 'u8[8192]{0}', space=vmem, size = 0x2000, scoped, tag = 'input window, operand 2']
    #allocation8 [shape = 'u8[8192]{0}', space=vmem, size = 0x2000, scoped, tag = 'output window, operand 0']
    %9 = vsyncpa [#allocation3], 0
    %s10 = scalar_lea.sflag [#allocation3], 1
    %11 = vsyncpa %s10, 0
    %12 = vsyncpa [#allocation6], 0
    %s13 = scalar_lea.sflag [#allocation6], 1
    %14 = vsyncpa %s13, 0
    %15 = vsyncpa [#allocation4], 0
    %s16 = scalar_lea.sflag [#allocation4], 1
    %17 = vsyncpa %s16, 0
    loop: start=0, step=1, limit=4
    $region2: #{tpu_custom_call.1} parent=1 // loop_pre_header
      _
    $region3: #{tpu_custom_call.1} parent=1 // loop_header
      %s19 = sphi 0, %s23
      %p20 = scmp.ge.s32.totalorder %s19, 4
      %s29 = sphi 0, %s31
      %s32 = sphi 0, %s29
      %s33 = sphi 0, %s32
      %s49 = sphi 0, %s33
      %s55 = sphi 0, %s57
      %s58 = sphi 0, %s55
      %s59 = sphi 0, %s58
      %s75 = sphi 0, %s59
      %s81 = sphi 0, %s83
      %s84 = sphi 0, %s81
      %s85 = sphi 0, %s84
      %s101 = sphi 0, %s85
      %s107 = sphi 0, %s109
      %s110 = sphi 0, %s107
      %s111 = sphi 0, %s110
      %s127 = sphi 0, %s111
      %s133 = sphi 0, %s135
      %s136 = sphi 0, %s133
      %s137 = sphi 0, %s136
      %s153 = sphi 0, %s137
    $region4: #{tpu_custom_call.1} parent=1 // loop_header_branch
      %22 = sbr.rel (%p20) target = $region8
    $region5: #{tpu_custom_call.1} parent=1 // loop_body
      %s24 = ssub.s32 %s19, 1
      %s25 = ssub.s32 %s19, 2
      %s26 = sadd.s32 %s19, 1
      %s27 = ssub.s32 %s19, %s26
      %p28 = scmp.eq.s32.totalorder %s27, 0
      %s30 = sadd.s32 %s29, 1
      %s31 = scalar_select %p28, %s29, %s30
      %p34 = pneg %p28
      %p35 = scmp.eq.s32.totalorder %s19, 1
      %p36 = por %p34, %p35
      %p37 = scmp.ne.s32.totalorder %s29, %s32
      %p38 = scmp.eq.s32.totalorder %s19, 0
      %p39 = por %p37, %p38
      %p40 = scmp.ne.s32.totalorder %s29, %s32
      %p41 = scmp.eq.s32.totalorder %s24, 1
      %p42 = por %p40, %p41
      %p43 = scmp.ne.s32.totalorder %s32, %s33
      %p44 = scmp.eq.s32.totalorder %s24, 0
      %p45 = por %p43, %p44
      %p46 = scmp.ne.s32.totalorder %s32, %s33
      %p47 = scmp.eq.s32.totalorder %s25, 1
      %p48 = por %p46, %p47
      %p50 = scmp.ne.s32.totalorder %s33, %s49
      %p51 = scmp.eq.s32.totalorder %s25, 0
      %p52 = por %p50, %p51
      %s53 = ssub.s32 %s19, %s26
      %p54 = scmp.eq.s32.totalorder %s53, 0
      %s56 = sadd.s32 %s55, 1
      %s57 = scalar_select %p54, %s55, %s56
      %p60 = pneg %p54
      %p61 = scmp.eq.s32.totalorder %s19, 1
      %p62 = por %p60, %p61
      %p63 = scmp.ne.s32.totalorder %s55, %s58
      %p64 = scmp.eq.s32.totalorder %s19, 0
      %p65 = por %p63, %p64
      %p66 = scmp.ne.s32.totalorder %s55, %s58
      %p67 = scmp.eq.s32.totalorder %s24, 1
      %p68 = por %p66, %p67
      %p69 = scmp.ne.s32.totalorder %s58, %s59
      %p70 = scmp.eq.s32.totalorder %s24, 0
      %p71 = por %p69, %p70
      %p72 = scmp.ne.s32.totalorder %s58, %s59
      %p73 = scmp.eq.s32.totalorder %s25, 1
      %p74 = por %p72, %p73
      %p76 = scmp.ne.s32.totalorder %s59, %s75
      %p77 = scmp.eq.s32.totalorder %s25, 0
      %p78 = por %p76, %p77
      %s79 = ssub.s32 %s19, %s26
      %p80 = scmp.eq.s32.totalorder %s79, 0
      %s82 = sadd.s32 %s81, 1
      %s83 = scalar_select %p80, %s81, %s82
      %p86 = pneg %p80
      %p87 = scmp.eq.s32.totalorder %s19, 1
      %p88 = por %p86, %p87
      %p89 = scmp.ne.s32.totalorder %s81, %s84
      %p90 = scmp.eq.s32.totalorder %s19, 0
      %p91 = por %p89, %p90
      %p92 = scmp.ne.s32.totalorder %s81, %s84
      %p93 = scmp.eq.s32.totalorder %s24, 1
      %p94 = por %p92, %p93
      %p95 = scmp.ne.s32.totalorder %s84, %s85
      %p96 = scmp.eq.s32.totalorder %s24, 0
      %p97 = por %p95, %p96
      %p98 = scmp.ne.s32.totalorder %s84, %s85
      %p99 = scmp.eq.s32.totalorder %s25, 1
      %p100 = por %p98, %p99
      %p102 = scmp.ne.s32.totalorder %s85, %s101
      %p103 = scmp.eq.s32.totalorder %s25, 0
      %p104 = por %p102, %p103
      %s105 = ssub.s32 %s19, %s26
      %p106 = scmp.eq.s32.totalorder %s105, 0
      %s108 = sadd.s32 %s107, 1
      %s109 = scalar_select %p106, %s107, %s108
      %p112 = pneg %p106
      %p113 = scmp.eq.s32.totalorder %s19, 1
      %p114 = por %p112, %p113
      %p115 = scmp.ne.s32.totalorder %s107, %s110
      %p116 = scmp.eq.s32.totalorder %s19, 0
      %p117 = por %p115, %p116
      %p118 = scmp.ne.s32.totalorder %s107, %s110
      %p119 = scmp.eq.s32.totalorder %s24, 1
      %p120 = por %p118, %p119
      %p121 = scmp.ne.s32.totalorder %s110, %s111
      %p122 = scmp.eq.s32.totalorder %s24, 0
      %p123 = por %p121, %p122
      %p124 = scmp.ne.s32.totalorder %s110, %s111
      %p125 = scmp.eq.s32.totalorder %s25, 1
      %p126 = por %p124, %p125
      %p128 = scmp.ne.s32.totalorder %s111, %s127
      %p129 = scmp.eq.s32.totalorder %s25, 0
      %p130 = por %p128, %p129
      %s131 = ssub.s32 %s19, %s26
      %p132 = scmp.eq.s32.totalorder %s131, 0
      %s134 = sadd.s32 %s133, 1
      %s135 = scalar_select %p132, %s133, %s134
      %p138 = pneg %p132
      %p139 = scmp.eq.s32.totalorder %s19, 1
      %p140 = por %p138, %p139
      %p141 = scmp.ne.s32.totalorder %s133, %s136
      %p142 = scmp.eq.s32.totalorder %s19, 0
      %p143 = por %p141, %p142
      %p144 = scmp.ne.s32.totalorder %s133, %s136
      %p145 = scmp.eq.s32.totalorder %s24, 1
      %p146 = por %p144, %p145
      %p147 = scmp.ne.s32.totalorder %s136, %s137
      %p148 = scmp.eq.s32.totalorder %s24, 0
      %p149 = por %p147, %p148
      %p150 = scmp.ne.s32.totalorder %s136, %s137
      %p151 = scmp.eq.s32.totalorder %s25, 1
      %p152 = por %p150, %p151
      %p154 = scmp.ne.s32.totalorder %s137, %s153
      %p155 = scmp.eq.s32.totalorder %s25, 0
      %p156 = por %p154, %p155
      %p157 = scmp.le.s32.totalorder 1, %s19
      %p158 = scmp.lt.s32.totalorder %s19, 3
      %p159 = pnand %p157, %p158
      %p160 = pneg %p159
      // Predicated region
      $region9: #{tpu_custom_call.1} parent=5 // pred_check
        _
      $region10: #{tpu_custom_call.1} parent=5 // pred_check_branch
        %162 = sbr.rel (%p159) target = $region12
      $region11: #{tpu_custom_call.1} parent=5 // pred_region
        %s163 = ssub.s32 %s19, 1
      $region12: #{tpu_custom_call.1} parent=5 // pred_fallthru
        _
      %p164 = scmp.lt.s32.totalorder %s19, 2
      // Predicated region
      $region13: #{tpu_custom_call.1} parent=5 // pred_check
        %p165 = pneg %p164
      $region14: #{tpu_custom_call.1} parent=5 // pred_check_branch
        %167 = sbr.rel (%p165) target = $region16
      $region15: #{tpu_custom_call.1} parent=5 // pred_region
        // Predicated region
        $region17: #{tpu_custom_call.1} parent=15 // pred_check
          %p168 = pneg %p39
        $region18: #{tpu_custom_call.1} parent=15 // pred_check_branch
          %170 = sbr.rel (%p168) target = $region20
        $region19: #{tpu_custom_call.1} parent=15 // pred_region
          %s171 = sand.u32 %s29, 1
          %s172 = scalar_lea.sflag [#allocation3], %s171
          %s173 = sand.u32 %s29, 1
          %s174 = smul.addr %s173, 8
          %s175 = scalar_lea.vmem [#allocation2], %s174
          %177 = vsyncadd %s172, 0
          %s178 = smul.addr %s19, 8
          %s179 = scalar_lea.hbm %s0, %s178
          %s181 = sshll.u32 %s179, 4
          %s182 = int_to_ptr.hbm [resolvable:$true] %s181
          %s183 = sshll.u32 %s175, 4
          %s184 = int_to_ptr.vmem [resolvable:$true] %s183
          %186 = dma.hbm_to_vmem [thread:$0]  %s182, 128, %s184, %s172
        $region20: #{tpu_custom_call.1} parent=15 // pred_fallthru
          _
        // Predicated region
        $region21: #{tpu_custom_call.1} parent=15 // pred_check
          %p187 = pneg %p65
        $region22: #{tpu_custom_call.1} parent=15 // pred_check_branch
          %189 = sbr.rel (%p187) target = $region24
        $region23: #{tpu_custom_call.1} parent=15 // pred_region
          %s190 = sand.u32 %s19, 1
          %s191 = scalar_lea.sflag [#allocation6], %s190
          %s192 = sand.u32 %s55, 1
          %s193 = smul.addr %s192, 8
          %s194 = scalar_lea.vmem [#allocation5], %s193
          %196 = vsyncadd %s191, 0
          %s197 = smul.addr %s19, 8
          %s198 = scalar_lea.hbm %s1, %s197
          %s200 = sshll.u32 %s198, 4
          %s201 = int_to_ptr.hbm [resolvable:$true] %s200
          %s202 = sshll.u32 %s194, 4
          %s203 = int_to_ptr.vmem [resolvable:$true] %s202
          %205 = dma.hbm_to_vmem [thread:$0]  %s201, 128, %s203, %s191
        $region24: #{tpu_custom_call.1} parent=15 // pred_fallthru
          _
        // Predicated region
        $region25: #{tpu_custom_call.1} parent=15 // pred_check
          %p206 = pneg %p91
        $region26: #{tpu_custom_call.1} parent=15 // pred_check_branch
          %208 = sbr.rel (%p206) target = $region28
        $region27: #{tpu_custom_call.1} parent=15 // pred_region
          %s209 = sand.u32 %s19, 1
          %s210 = scalar_lea.sflag [#allocation6], %s209
          %s211 = sand.u32 %s81, 1
          %s212 = smul.addr %s211, 8
          %s213 = scalar_lea.vmem [#allocation7], %s212
          %215 = vsyncadd %s210, 0
          %s216 = smul.addr %s19, 8
          %s217 = scalar_lea.hbm %s2, %s216
          %s219 = sshll.u32 %s217, 4
          %s220 = int_to_ptr.hbm [resolvable:$true] %s219
          %s221 = sshll.u32 %s213, 4
          %s222 = int_to_ptr.vmem [resolvable:$true] %s221
          %224 = dma.hbm_to_vmem [thread:$0]  %s220, 128, %s222, %s210
        $region28: #{tpu_custom_call.1} parent=15 // pred_fallthru
          _
        // Predicated region
        $region29: #{tpu_custom_call.1} parent=15 // pred_check
          %p225 = pneg %p117
        $region30: #{tpu_custom_call.1} parent=15 // pred_check_branch
          %227 = sbr.rel (%p225) target = $region32
        $region31: #{tpu_custom_call.1} parent=15 // pred_region
          %p228 = scmp.lt.s32.totalorder %s19, 1
          %s229 = scalar_select %p228, %s19, 1
          %s230 = scalar_lea.vmem %s3, %s229
        $region32: #{tpu_custom_call.1} parent=15 // pred_fallthru
          _
      $region16: #{tpu_custom_call.1} parent=5 // pred_fallthru
        _
      %p231 = scmp.le.s32.totalorder 1, %s19
      %p232 = scmp.lt.s32.totalorder %s19, 3
      %p233 = pnand %p231, %p232
      %p234 = pneg %p233
      // Predicated region
      $region33: #{tpu_custom_call.1} parent=5 // pred_check
        _
      $region34: #{tpu_custom_call.1} parent=5 // pred_check_branch
        %236 = sbr.rel (%p233) target = $region36
      $region35: #{tpu_custom_call.1} parent=5 // pred_region
        %s237 = ssub.s32 %s19, 1
        %s238 = sand.u32 %s32, 1
        %s239 = scalar_lea.sflag [#allocation3], %s238
        %s240 = sand.u32 %s32, 1
        %s241 = smul.addr %s240, 8
        %s242 = scalar_lea.vmem [#allocation2], %s241
        // Predicated region
        $region37: #{tpu_custom_call.1} parent=35 // pred_check
          %p243 = pneg %p45
        $region38: #{tpu_custom_call.1} parent=35 // pred_check_branch
          %245 = sbr.rel (%p243) target = $region40
        $region39: #{tpu_custom_call.1} parent=35 // pred_region
          %247 = dma.done %s239, 128
        $region40: #{tpu_custom_call.1} parent=35 // pred_fallthru
          _
        %s248 = sand.u32 %s24, 1
        %s249 = scalar_lea.sflag [#allocation6], %s248
        %s250 = sand.u32 %s58, 1
        %s251 = smul.addr %s250, 8
        %s252 = scalar_lea.vmem [#allocation5], %s251
        // Predicated region
        $region41: #{tpu_custom_call.1} parent=35 // pred_check
          %p253 = pneg %p71
        $region42: #{tpu_custom_call.1} parent=35 // pred_check_branch
          %255 = sbr.rel (%p253) target = $region44
        $region43: #{tpu_custom_call.1} parent=35 // pred_region
          %257 = dma.done %s249, 128
        $region44: #{tpu_custom_call.1} parent=35 // pred_fallthru
          _
        %s258 = sand.u32 %s24, 1
        %s259 = scalar_lea.sflag [#allocation6], %s258
        %s260 = sand.u32 %s84, 1
        %s261 = smul.addr %s260, 8
        %s262 = scalar_lea.vmem [#allocation7], %s261
        // Predicated region
        $region45: #{tpu_custom_call.1} parent=35 // pred_check
          %p263 = pneg %p97
        $region46: #{tpu_custom_call.1} parent=35 // pred_check_branch
          %265 = sbr.rel (%p263) target = $region48
        $region47: #{tpu_custom_call.1} parent=35 // pred_region
          %267 = dma.done %s259, 128
        $region48: #{tpu_custom_call.1} parent=35 // pred_fallthru
          _
        %s268 = sand.u32 %s32, 1
        %s269 = scalar_lea.sflag [#allocation3], %s268
        %s270 = sand.u32 %s32, 1
        %s271 = smul.addr %s270, 8
        %s272 = scalar_lea.vmem [#allocation2], %s271
        %p273 = pneg %p45
        %p274 = pneg %p42
        %s275 = sand.u32 %s24, 1
        %s276 = scalar_lea.sflag [#allocation6], %s275
        %s277 = sand.u32 %s58, 1
        %s278 = smul.addr %s277, 8
        %s279 = scalar_lea.vmem [#allocation5], %s278
        %p280 = pneg %p71
        %p281 = pneg %p68
        %s282 = sand.u32 %s24, 1
        %s283 = scalar_lea.sflag [#allocation6], %s282
        %s284 = sand.u32 %s84, 1
        %s285 = smul.addr %s284, 8
        %s286 = scalar_lea.vmem [#allocation7], %s285
        %p287 = pneg %p97
        %p288 = pneg %p94
        %p289 = scmp.lt.s32.totalorder %s24, 1
        %s290 = scalar_select %p289, %s24, 1
        %s291 = scalar_lea.vmem %s3, %s290
        %p292 = pneg %p123
        %p293 = pneg %p120
        %p294 = pneg %p149
        %p295 = pneg %p146
        %s296 = sand.u32 %s136, 1
        %s297 = scalar_lea.sflag [#allocation4], %s296
        %s298 = sand.u32 %s136, 1
        %s299 = smul.addr %s298, 8
        %s300 = scalar_lea.vmem [#allocation8], %s299
        %p301 = scmp.lt.s32.totalorder %s24, 1
        %s302 = scalar_select %p301, %s24, 1
        %s303 = scalar_lea.vmem %s3, %s302
        %v304 = vld [vmem:[%s303] sm:$0x1]
        %v305 = vld [vmem:[%s242] sm:$0xff]
        %v306 = vmul.f32 %v305, 0.17677669
        %v307 = vld [vmem:[%s252] sm:$0xff]
        %v308 = vld [vmem:[%s262] sm:$0xff]
        %v310 = vperm.slane %v304, 0
        %vm312 = vcmask 261120
        %v314 = vsel %vm312, %v306, 0
        %v317 = vsel %vm312, %v307, 0
        %319 = vmatpush.xpose.msra.mxu0 0.0
        %320 = vmatpush.xpose.msra.mxu0 0.0
        %321 = vmatpush.xpose.msra.mxu0 0.0
        %322 = vmatpush.xpose.msra.mxu0 0.0
        %323 = vmatpush.xpose.msra.mxu0 0.0
        %324 = vmatpush.xpose.msra.mxu0 0.0
        %325 = vmatpush.xpose.msra.mxu0 0.0
        %326 = vmatpush.xpose.msra.mxu0 0.0
        %327 = vmatpush.xpose.msra.mxu0 0.0
        %328 = vmatpush.xpose.msra.mxu0 0.0
        %329 = vmatpush.xpose.msra.mxu0 0.0
        %330 = vmatpush.xpose.msra.mxu0 0.0
        %331 = vmatpush.xpose.msra.mxu0 0.0
        %332 = vmatpush.xpose.msra.mxu0 0.0
        %333 = vmatpush.xpose.msra.mxu0 0.0
        %334 = vmatpush.xpose.msra.mxu0 %v317
        %335 = vmatmul.f32.gmra.mxu0 %v314
        %v336 = vpop.f32.mrf.mxu0
        %v337 = vadd.f32 %v310, %v336
        %338 = vdwg.mxu0
        %vm339 = vcmask 64512
        %v340 = vsel %vm339, %v337, -inf
        %341 = vmax.xlane.f32.xlu0 %v340
        %v342 = vpop.xlane.xlu0 %341
        %v343 = vsub.f32 %v337, %v342
        %v344 = vmul.f32 %v343, 1.442695
        %v345 = vpow.pop %v344
        %v346 = vsel %vm339, %v345, 0.0
        %347 = vadd.xlane.f32.xlu0 %v346
        %v348 = vpop.xlane.xlu0 %347
        %v349 = vrcp.pop %v348
        %v350 = vmul.f32 %v345, %v349
        %v352 = vsel %vm339, %v350, 0
        %354 = vmatpush.msra.mxu0 0.0
        %355 = vmatpush.msra.mxu0 0.0
        %356 = vmatpush.msra.mxu0 0.0
        %357 = vmatpush.msra.mxu0 0.0
        %358 = vmatpush.msra.mxu0 0.0
        %359 = vmatpush.msra.mxu0 0.0
        %360 = vmatpush.msra.mxu0 0.0
        %361 = vmatpush.msra.mxu0 0.0
        %362 = vmatpush.msra.mxu0 0.0
        %363 = vmatpush.msra.mxu0 0.0
        %364 = vmatpush.msra.mxu0 0.0
        %365 = vmatpush.msra.mxu0 0.0
        %366 = vmatpush.msra.mxu0 0.0
        %367 = vmatpush.msra.mxu0 0.0
        %368 = vmatpush.msra.mxu0 0.0
        %369 = vmatpush.msra.mxu0 %v308
        %370 = vmatmul.f32.gmra.mxu0 %v352
        %v371 = vpop.f32.mrf.mxu0
        %v372 = vadd.f32 0.0, %v371
        %373 = vdwg.mxu0
        %374 = vst.msk [vmem:[%s300] sm:$0xff] %vm312, %v372
        %v375 = vld [vmem:[%s242] sm:$0xff]
        %v376 = vmul.f32 %v375, 0.17677669
        %v377 = vld [vmem:[%s252] sm:$0xff]
        %v378 = vld [vmem:[%s262] sm:$0xff]
        %380 = vrot.lane.b32.xlu0 %v376, 96
        %v381 = vpop.permute.xlu0 %380
        %383 = vrot.lane.b32.xlu0 %v377, 96
        %v384 = vpop.permute.xlu0 %383
        %v385 = vsel %vm312, %v381, 0
        %v387 = vsel %vm312, %v384, 0
        %389 = vmatpush.xpose.msra.mxu0 0.0
        %390 = vmatpush.xpose.msra.mxu0 0.0
        %391 = vmatpush.xpose.msra.mxu0 0.0
        %392 = vmatpush.xpose.msra.mxu0 0.0
        %393 = vmatpush.xpose.msra.mxu0 0.0
        %394 = vmatpush.xpose.msra.mxu0 0.0
        %395 = vmatpush.xpose.msra.mxu0 0.0
        %396 = vmatpush.xpose.msra.mxu0 0.0
        %397 = vmatpush.xpose.msra.mxu0 0.0
        %398 = vmatpush.xpose.msra.mxu0 0.0
        %399 = vmatpush.xpose.msra.mxu0 0.0
        %400 = vmatpush.xpose.msra.mxu0 0.0
        %401 = vmatpush.xpose.msra.mxu0 0.0
        %402 = vmatpush.xpose.msra.mxu0 0.0
        %403 = vmatpush.xpose.msra.mxu0 0.0
        %404 = vmatpush.xpose.msra.mxu0 %v387
        %405 = vmatmul.f32.gmra.mxu0 %v385
        %v406 = vpop.f32.mrf.mxu0
        %v407 = vadd.f32 %v310, %v406
        %408 = vdwg.mxu0
        %v409 = vsel %vm339, %v407, -inf
        %410 = vmax.xlane.f32.xlu0 %v409
        %v411 = vpop.xlane.xlu0 %410
        %v412 = vsub.f32 %v407, %v411
        %v413 = vmul.f32 %v412, 1.442695
        %v414 = vpow.pop %v413
        %v415 = vsel %vm339, %v414, 0.0
        %416 = vadd.xlane.f32.xlu0 %v415
        %v417 = vpop.xlane.xlu0 %416
        %v418 = vrcp.pop %v417
        %v419 = vmul.f32 %v414, %v418
        %421 = vrot.lane.b32.xlu0 %v378, 96
        %v422 = vpop.permute.xlu0 %421
        %v425 = vsel %vm339, %v419, 0
        %427 = vmatpush.msra.mxu0 0.0
        %428 = vmatpush.msra.mxu0 0.0
        %429 = vmatpush.msra.mxu0 0.0
        %430 = vmatpush.msra.mxu0 0.0
        %431 = vmatpush.msra.mxu0 0.0
        %432 = vmatpush.msra.mxu0 0.0
        %433 = vmatpush.msra.mxu0 0.0
        %434 = vmatpush.msra.mxu0 0.0
        %435 = vmatpush.msra.mxu0 0.0
        %436 = vmatpush.msra.mxu0 0.0
        %437 = vmatpush.msra.mxu0 0.0
        %438 = vmatpush.msra.mxu0 0.0
        %439 = vmatpush.msra.mxu0 0.0
        %440 = vmatpush.msra.mxu0 0.0
        %441 = vmatpush.msra.mxu0 0.0
        %442 = vmatpush.msra.mxu0 %v422
        %443 = vmatmul.f32.gmra.mxu0 %v425
        %v444 = vpop.f32.mrf.mxu0
        %v445 = vadd.f32 0.0, %v444
        %446 = vdwg.mxu0
        %448 = vrot.lane.b32.xlu0 %v445, 32
        %v449 = vpop.permute.xlu0 %448
        %vm451 = vcmask 523520
        %452 = vst.msk [vmem:[%s300] sm:$0xff] %vm451, %v449
        %v453 = vld [vmem:[%s242] sm:$0xff]
        %v454 = vmul.f32 %v453, 0.17677669
        %v455 = vld [vmem:[%s252] sm:$0xff]
        %v456 = vld [vmem:[%s262] sm:$0xff]
        %458 = vrot.lane.b32.xlu0 %v454, 64
        %v459 = vpop.permute.xlu0 %458
        %461 = vrot.lane.b32.xlu0 %v455, 64
        %v462 = vpop.permute.xlu0 %461
        %v463 = vsel %vm312, %v459, 0
        %v465 = vsel %vm312, %v462, 0
        %467 = vmatpush.xpose.msra.mxu0 0.0
        %468 = vmatpush.xpose.msra.mxu0 0.0
        %469 = vmatpush.xpose.msra.mxu0 0.0
        %470 = vmatpush.xpose.msra.mxu0 0.0
        %471 = vmatpush.xpose.msra.mxu0 0.0
        %472 = vmatpush.xpose.msra.mxu0 0.0
        %473 = vmatpush.xpose.msra.mxu0 0.0
        %474 = vmatpush.xpose.msra.mxu0 0.0
        %475 = vmatpush.xpose.msra.mxu0 0.0
        %476 = vmatpush.xpose.msra.mxu0 0.0
        %477 = vmatpush.xpose.msra.mxu0 0.0
        %478 = vmatpush.xpose.msra.mxu0 0.0
        %479 = vmatpush.xpose.msra.mxu0 0.0
        %480 = vmatpush.xpose.msra.mxu0 0.0
        %481 = vmatpush.xpose.msra.mxu0 0.0
        %482 = vmatpush.xpose.msra.mxu0 %v465
        %483 = vmatmul.f32.gmra.mxu0 %v463
        %v484 = vpop.f32.mrf.mxu0
        %v485 = vadd.f32 %v310, %v484
        %486 = vdwg.mxu0
        %v487 = vsel %vm339, %v485, -inf
        %488 = vmax.xlane.f32.xlu0 %v487
        %v489 = vpop.xlane.xlu0 %488
        %v490 = vsub.f32 %v485, %v489
        %v491 = vmul.f32 %v490, 1.442695
        %v492 = vpow.pop %v491
        %v493 = vsel %vm339, %v492, 0.0
        %494 = vadd.xlane.f32.xlu0 %v493
        %v495 = vpop.xlane.xlu0 %494
        %v496 = vrcp.pop %v495
        %v497 = vmul.f32 %v492, %v496
        %499 = vrot.lane.b32.xlu0 %v456, 64
        %v500 = vpop.permute.xlu0 %499
        %v503 = vsel %vm339, %v497, 0
        %505 = vmatpush.msra.mxu0 0.0
        %506 = vmatpush.msra.mxu0 0.0
        %507 = vmatpush.msra.mxu0 0.0
        %508 = vmatpush.msra.mxu0 0.0
        %509 = vmatpush.msra.mxu0 0.0
        %510 = vmatpush.msra.mxu0 0.0
        %511 = vmatpush.msra.mxu0 0.0
        %512 = vmatpush.msra.mxu0 0.0
        %513 = vmatpush.msra.mxu0 0.0
        %514 = vmatpush.msra.mxu0 0.0
        %515 = vmatpush.msra.mxu0 0.0
        %516 = vmatpush.msra.mxu0 0.0
        %517 = vmatpush.msra.mxu0 0.0
        %518 = vmatpush.msra.mxu0 0.0
        %519 = vmatpush.msra.mxu0 0.0
        %520 = vmatpush.msra.mxu0 %v500
        %521 = vmatmul.f32.gmra.mxu0 %v503
        %v522 = vpop.f32.mrf.mxu0
        %v523 = vadd.f32 0.0, %v522
        %524 = vdwg.mxu0
        %526 = vrot.lane.b32.xlu0 %v523, 64
        %v527 = vpop.permute.xlu0 %526
        %vm529 = vcmask 785920
        %530 = vst.msk [vmem:[%s300] sm:$0xff] %vm529, %v527
        %v531 = vld [vmem:[%s242] sm:$0xff]
        %v532 = vmul.f32 %v531, 0.17677669
        %v533 = vld [vmem:[%s252] sm:$0xff]
        %v534 = vld [vmem:[%s262] sm:$0xff]
        %536 = vrot.lane.b32.xlu0 %v532, 32
        %v537 = vpop.permute.xlu0 %536
        %539 = vrot.lane.b32.xlu0 %v533, 32
        %v540 = vpop.permute.xlu0 %539
        %v541 = vsel %vm312, %v537, 0
        %v543 = vsel %vm312, %v540, 0
        %545 = vmatpush.xpose.msra.mxu0 0.0
        %546 = vmatpush.xpose.msra.mxu0 0.0
        %547 = vmatpush.xpose.msra.mxu0 0.0
        %548 = vmatpush.xpose.msra.mxu0 0.0
        %549 = vmatpush.xpose.msra.mxu0 0.0
        %550 = vmatpush.xpose.msra.mxu0 0.0
        %551 = vmatpush.xpose.msra.mxu0 0.0
        %552 = vmatpush.xpose.msra.mxu0 0.0
        %553 = vmatpush.xpose.msra.mxu0 0.0
        %554 = vmatpush.xpose.msra.mxu0 0.0
        %555 = vmatpush.xpose.msra.mxu0 0.0
        %556 = vmatpush.xpose.msra.mxu0 0.0
        %557 = vmatpush.xpose.msra.mxu0 0.0
        %558 = vmatpush.xpose.msra.mxu0 0.0
        %559 = vmatpush.xpose.msra.mxu0 0.0
        %560 = vmatpush.xpose.msra.mxu0 %v543
        %561 = vmatmul.f32.gmra.mxu0 %v541
        %v562 = vpop.f32.mrf.mxu0
        %v563 = vadd.f32 %v310, %v562
        %564 = vdwg.mxu0
        %v565 = vsel %vm339, %v563, -inf
        %566 = vmax.xlane.f32.xlu0 %v565
        %v567 = vpop.xlane.xlu0 %566
        %v568 = vsub.f32 %v563, %v567
        %v569 = vmul.f32 %v568, 1.442695
        %v570 = vpow.pop %v569
        %v571 = vsel %vm339, %v570, 0.0
        %572 = vadd.xlane.f32.xlu0 %v571
        %v573 = vpop.xlane.xlu0 %572
        %v574 = vrcp.pop %v573
        %v575 = vmul.f32 %v570, %v574
        %577 = vrot.lane.b32.xlu0 %v534, 32
        %v578 = vpop.permute.xlu0 %577
        %v581 = vsel %vm339, %v575, 0
        %583 = vmatpush.msra.mxu0 0.0
        %584 = vmatpush.msra.mxu0 0.0
        %585 = vmatpush.msra.mxu0 0.0
        %586 = vmatpush.msra.mxu0 0.0
        %587 = vmatpush.msra.mxu0 0.0
        %588 = vmatpush.msra.mxu0 0.0
        %589 = vmatpush.msra.mxu0 0.0
        %590 = vmatpush.msra.mxu0 0.0
        %591 = vmatpush.msra.mxu0 0.0
        %592 = vmatpush.msra.mxu0 0.0
        %593 = vmatpush.msra.mxu0 0.0
        %594 = vmatpush.msra.mxu0 0.0
        %595 = vmatpush.msra.mxu0 0.0
        %596 = vmatpush.msra.mxu0 0.0
        %597 = vmatpush.msra.mxu0 0.0
        %598 = vmatpush.msra.mxu0 %v578
        %599 = vmatmul.f32.gmra.mxu0 %v581
        %v600 = vpop.f32.mrf.mxu0
        %v601 = vadd.f32 0.0, %v600
        %602 = vdwg.mxu0
        %604 = vrot.lane.b32.xlu0 %v601, 96
        %v605 = vpop.permute.xlu0 %604
        %vm607 = vcmask 1048320
        %608 = vst.msk [vmem:[%s300] sm:$0xff] %vm607, %v605
        %s609 = sand.u32 %s136, 1
        %s610 = scalar_lea.sflag [#allocation4], %s609
        %s611 = sand.u32 %s136, 1
        %s612 = smul.addr %s611, 8
        %s613 = scalar_lea.vmem [#allocation8], %s612
        // Predicated region
        $region49: #{tpu_custom_call.1} parent=35 // pred_check
          %p614 = pneg %p146
        $region50: #{tpu_custom_call.1} parent=35 // pred_check_branch
          %616 = sbr.rel (%p614) target = $region52
        $region51: #{tpu_custom_call.1} parent=35 // pred_region
          %618 = vsyncadd %s610, 0
          %s619 = smul.addr %s24, 8
          %s620 = scalar_lea.hbm %s4, %s619
          %s622 = sshll.u32 %s613, 4
          %s623 = int_to_ptr.vmem [resolvable:$true] %s622
          %s624 = sshll.u32 %s620, 4
          %s625 = int_to_ptr.hbm [resolvable:$true] %s624
          %627 = dma.vmem_to_hbm [thread:$0]  %s623, 128, %s625, %s610
        $region52: #{tpu_custom_call.1} parent=35 // pred_fallthru
          _
      $region36: #{tpu_custom_call.1} parent=5 // pred_fallthru
        _
      %p628 = scmp.le.s32.totalorder 2, %s19
      // Predicated region
      $region53: #{tpu_custom_call.1} parent=5 // pred_check
        %p629 = pneg %p628
      $region54: #{tpu_custom_call.1} parent=5 // pred_check_branch
        %631 = sbr.rel (%p629) target = $region56
      $region55: #{tpu_custom_call.1} parent=5 // pred_region
        %s632 = ssub.s32 %s19, 2
        // Predicated region
        $region57: #{tpu_custom_call.1} parent=55 // pred_check
          %p633 = pneg %p152
        $region58: #{tpu_custom_call.1} parent=55 // pred_check_branch
          %635 = sbr.rel (%p633) target = $region60
        $region59: #{tpu_custom_call.1} parent=55 // pred_region
          %s636 = sand.u32 %s137, 1
          %s637 = scalar_lea.sflag [#allocation4], %s636
          %s638 = sand.u32 %s137, 1
          %s639 = smul.addr %s638, 8
          %s640 = scalar_lea.vmem [#allocation8], %s639
          %642 = dma.done %s637, 128
        $region60: #{tpu_custom_call.1} parent=55 // pred_fallthru
          _
      $region56: #{tpu_custom_call.1} parent=5 // pred_fallthru
        _
    $region6: #{tpu_custom_call.1} parent=1 // loop_footer
      %s23 = sadd.s32 1, %s19
    $region7: #{tpu_custom_call.1} parent=1 // loop_footer_branch
      %18 = sbr.rel target = $region3
    $region8: #{tpu_custom_call.1} parent=1 // loop_exit
      _
    %643 = vsyncpa [#allocation3], 1
    %s644 = scalar_lea.sflag [#allocation3], 1
    %645 = vsyncpa %s644, 1
    %646 = vsyncpa [#allocation6], 1
    %s647 = scalar_lea.sflag [#allocation6], 1
    %648 = vsyncpa %s647, 1
    %649 = vsyncpa [#allocation4], 1
    %s650 = scalar_lea.sflag [#allocation4], 1
    %651 = vsyncpa %s650, 1

</llo_original>
